<compile_context>
chip_gen: v5e
topology: v5e:2x2
jax: 0.10.0
libtpu: 0.0.40
codegen_flags: <defaults>
</compile_context>

<pallas_src>
import jax
import jax.numpy as jnp
from jax.experimental import pallas as pl
from jax.experimental.pallas import tpu as pltpu

_LANE = 128


# --------------------------------------------------------------------------- #
# Kernel bodies: pure VPU elementwise work; rank-agnostic via broadcasting.
# --------------------------------------------------------------------------- #
def _graph_embed_fused_kernel(span_ref, rel_ref, span_m_ref, rel_m_ref,
                              node_id_ref, edge_id_ref, nodes_ref, edges_ref):
    span = span_ref[...]
    rel = rel_ref[...]
    # Mask arrives as int8 (or already the activation dtype); cast in-kernel.
    nodes_ref[...] = span * span_m_ref[...].astype(span.dtype) + node_id_ref[...]
    edges_ref[...] = rel * rel_m_ref[...].astype(rel.dtype) + edge_id_ref[...]


def _graph_embed_single_kernel(rep_ref, m_ref, id_ref, out_ref):
    rep = rep_ref[...]
    out_ref[...] = rep * m_ref[...].astype(rep.dtype) + id_ref[...]


# --------------------------------------------------------------------------- #
# Sizing helpers.
# --------------------------------------------------------------------------- #
def _round_up(x, m):
    return -(-x // m) * m


def _sublane_quantum(dtype):
    # Sub-32-bit dtypes pack along sublanes: f32 -> 8, bf16 -> 16, int8 -> 32.
    return 8 * (4 // max(1, jnp.dtype(dtype).itemsize))


def _tile_vmem_bytes(block_shape, dtype):
    """VMEM bytes of one buffered copy of a block, incl. (sublane, lane) padding."""
    shape = tuple(int(d) for d in block_shape)
    if len(shape) == 1:
        shape = (1,) + shape
    *lead, s, l = shape
    n = 1
    for d in lead:
        n *= d
    return (n * _round_up(s, _sublane_quantum(dtype)) * _round_up(l, _LANE)
            * jnp.dtype(dtype).itemsize)


def _logical_bytes(block_shape, dtype):
    n = 1
    for d in block_shape:
        n *= int(d)
    return n * jnp.dtype(dtype).itemsize


def _vmem_capacity_bytes():
    try:
        info_fn = getattr(pltpu, "get_tpu_info", None)
        if info_fn is not None:
            cap = getattr(info_fn(), "vmem_capacity_bytes", None)
            if cap:
                return int(cap)
    except Exception:
        pass
    return 64 * 2 ** 20  # conservative: v7x per-TensorCore VMEM


def _divisors(n):
    return [d for d in range(1, n + 1) if n % d == 0]


def _as_mask_dtype(mask, rep_dtype):
    # Binary (bool/int) masks travel as int8 (4x less DMA than f32); arbitrary
    # float masks keep the activation dtype so semantics stay exact.
    if jnp.issubdtype(mask.dtype, jnp.bool_) or jnp.issubdtype(mask.dtype, jnp.integer):
        return mask.astype(jnp.int8)
    return mask.astype(rep_dtype)


def _pick_batch_block(batch, allowed, vmem_of_bb, streamed_of_bb, budget, floor):
    """Smallest block above the byte floor (max steps, prefer even step count);
    tiny problems get one big block; None => VMEM budget cannot be met."""
    feasible = [bb for bb in allowed if vmem_of_bb(bb) <= budget]
    if not feasible:
        return None
    meets = [bb for bb in feasible if streamed_of_bb(bb) >= floor]
    if meets:
        # Prefer an even number of grid steps (v7x has 2 TensorCores), then the
        # smallest block above the floor (keeps double-buffering effective).
        return min(meets, key=lambda bb: ((batch // bb) % 2, bb))
    return max(feasible)


# --------------------------------------------------------------------------- #
# Row-split fallback: flatten to [B*N, D] and tile rows (multiples of 8).
# --------------------------------------------------------------------------- #
def _embed_rows(reps2d, mask2d, ident, budget, floor, vmem_limit):
    R, D = reps2d.shape
    dtype = reps2d.dtype
    item = jnp.dtype(dtype).itemsize

    rt = max(8, _round_up(floor // max(1, 2 * D * item), 8))

    def fits(r):
        return 2 * (2 * _tile_vmem_bytes((r, D), dtype)
                    + _tile_vmem_bytes((r, 1), mask2d.dtype)
                    + _tile_vmem_bytes((1, D), dtype)) <= budget

    while rt > 8 and not fits(rt):
        rt -= 8
    # Note: if 8 rows x D still exceeds the budget (astronomically large D) we
    # proceed anyway and rely on vmem_limit headroom.
    if rt >= R:
        rt = R  # single block covering all rows (block dim == array dim: legal)

    rmap = lambda i: (i, 0)
    cmap = lambda i: (0, 0)
    return pl.pallas_call(
        _graph_embed_single_kernel,
        out_shape=jax.ShapeDtypeStruct((R, D), dtype),
        grid=(pl.cdiv(R, rt),),
        in_specs=[pl.BlockSpec((rt, D), rmap),
                  pl.BlockSpec((rt, 1), rmap),
                  pl.BlockSpec((1, D), cmap)],
        out_specs=pl.BlockSpec((rt, D), rmap),
        compiler_params=pltpu.CompilerParams(
            dimension_semantics=("parallel",),
            vmem_limit_bytes=vmem_limit),
    )(reps2d, mask2d, ident)


# --------------------------------------------------------------------------- #
# Public wrapper: matches GraphEmbedder.forward.
# --------------------------------------------------------------------------- #
def graph_embedder_forward(cand_span_reps, cand_rel_reps,
                           cand_span_masks, cand_rel_masks,
                           node_identifier, edge_identifier):
    """Returns (nodes, edges), matching GraphEmbedder.forward."""
    B, Ns, D = cand_span_reps.shape
    _, Nr, _ = cand_rel_reps.shape
    dtype = cand_span_reps.dtype

    vmem_cap = _vmem_capacity_bytes()
    budget = min(20 * 2 ** 20, vmem_cap // 3)       # double-buffered working set
    vmem_limit = min(32 * 2 ** 20, vmem_cap // 2)   # scoped VMEM limit (v7x-safe)
    floor = 2 * 2 ** 20                             # streamed bytes per grid step

    node_id = node_identifier.reshape(1, D).astype(dtype)
    edge_id = edge_identifier.reshape(1, D).astype(dtype)

    lane_dense_flat = (D % _LANE != 0
                       and (Ns * D) % _LANE == 0
                       and (Nr * D) % _LANE == 0)

    if lane_dense_flat:
        # Lane-dense path: view reps/outputs as [B, N*D]; expand masks to int8
        # [B, N*D]; tile identifiers to [1, N*D]. All last dims multiples of 128.
        span_in = cand_span_reps.reshape(B, Ns * D)
        rel_in = cand_rel_reps.reshape(B, Nr * D)
        span_m = jnp.broadcast_to(
            _as_mask_dtype(cand_span_masks, dtype)[:, :, None],
            (B, Ns, D)).reshape(B, Ns * D)
        rel_m = jnp.broadcast_to(
            _as_mask_dtype(cand_rel_masks, dtype)[:, :, None],
            (B, Nr, D)).reshape(B, Nr * D)
        node_id_in = jnp.tile(node_id, (1, Ns))     # [1, Ns*D]
        edge_id_in = jnp.tile(edge_id, (1, Nr))     # [1, Nr*D]

        # Block legality: lane dim already a multiple of 128; the batch (sublane)
        # block must be a multiple of 8 or the full batch.
        allowed = [d for d in _divisors(B) if d % 8 == 0 or d == B]

        def block_shapes(bb):
            return [((bb, Ns * D), dtype), ((bb, Nr * D), dtype),
                    ((bb, Ns * D), span_m.dtype), ((bb, Nr * D), rel_m.dtype),
                    ((1, Ns * D), dtype), ((1, Nr * D), dtype),
                    ((bb, Ns * D), dtype), ((bb, Nr * D), dtype)]

        def make_specs(bb):
            bmap = lambda b: (b, 0)
            cmap = lambda b: (0, 0)
            in_specs = [pl.BlockSpec((bb, Ns * D), bmap),
                        pl.BlockSpec((bb, Nr * D), bmap),
                        pl.BlockSpec((bb, Ns * D), bmap),
                        pl.BlockSpec((bb, Nr * D), bmap),
                        pl.BlockSpec((1, Ns * D), cmap),
                        pl.BlockSpec((1, Nr * D), cmap)]
            out_specs = (pl.BlockSpec((bb, Ns * D), bmap),
                         pl.BlockSpec((bb, Nr * D), bmap))
            return in_specs, out_specs

        out_shapes = (jax.ShapeDtypeStruct((B, Ns * D), dtype),
                      jax.ShapeDtypeStruct((B, Nr * D), dtype))
        inputs = (span_in, rel_in, span_m, rel_m, node_id_in, edge_id_in)
        reshape_out = lambda n, e: (n.reshape(B, Ns, D), e.reshape(B, Nr, D))
    else:
        # D is already lane-dense (multiple of 128) or cannot be flattened:
        # 3-D blocks whose last two dims equal the array dims (always legal),
        # compact int8 [B, N, 1] masks (no expansion traffic).
        span_in = cand_span_reps
        rel_in = cand_rel_reps
        span_m = _as_mask_dtype(cand_span_masks, dtype)[:, :, None]
        rel_m = _as_mask_dtype(cand_rel_masks, dtype)[:, :, None]
        node_id_in, edge_id_in = node_id, edge_id
        allowed = _divisors(B)

        def block_shapes(bb):
            return [((bb, Ns, D), dtype), ((bb, Nr, D), dtype),
                    ((bb, Ns, 1), span_m.dtype), ((bb, Nr, 1), rel_m.dtype),
                    ((1, D), dtype), ((1, D), dtype),
                    ((bb, Ns, D), dtype), ((bb, Nr, D), dtype)]

        def make_specs(bb):
            bmap = lambda b: (b, 0, 0)
            cmap = lambda b: (0, 0)
            in_specs = [pl.BlockSpec((bb, Ns, D), bmap),
                        pl.BlockSpec((bb, Nr, D), bmap),
                        pl.BlockSpec((bb, Ns, 1), bmap),
                        pl.BlockSpec((bb, Nr, 1), bmap),
                        pl.BlockSpec((1, D), cmap),
                        pl.BlockSpec((1, D), cmap)]
            out_specs = (pl.BlockSpec((bb, Ns, D), bmap),
                         pl.BlockSpec((bb, Nr, D), bmap))
            return in_specs, out_specs

        out_shapes = (jax.ShapeDtypeStruct((B, Ns, D), dtype),
                      jax.ShapeDtypeStruct((B, Nr, D), dtype))
        inputs = (span_in, rel_in, span_m, rel_m, node_id_in, edge_id_in)
        reshape_out = lambda n, e: (n, e)

    def vmem_of_bb(bb):
        # x2: the auto-pipeline double-buffers every block.
        return 2 * sum(_tile_vmem_bytes(s, dt) for s, dt in block_shapes(bb))

    def streamed_of_bb(bb):
        # Logical HBM bytes moved per grid step (reads + writes).
        return sum(_logical_bytes(s, dt) for s, dt in block_shapes(bb))

    bb = _pick_batch_block(B, allowed, vmem_of_bb, streamed_of_bb, budget, floor)

    if bb is not None:
        in_specs, out_specs = make_specs(bb)
        nodes, edges = pl.pallas_call(
            _graph_embed_fused_kernel,
            out_shape=out_shapes,
            grid=(B // bb,),
            in_specs=in_specs,
            out_specs=out_specs,
            compiler_params=pltpu.CompilerParams(
                dimension_semantics=("parallel",),
                vmem_limit_bytes=vmem_limit),
        )(*inputs)
        return reshape_out(nodes, edges)

    # Fallback: even a single-batch slab overflows the VMEM budget (very long
    # Ns / Nr). Split rows instead: two row-tiled calls on [B*N, D] views.
    nodes = _embed_rows(
        cand_span_reps.reshape(B * Ns, D),
        _as_mask_dtype(cand_span_masks, dtype).reshape(B * Ns, 1),
        node_id, budget, floor, vmem_limit)
    edges = _embed_rows(
        cand_rel_reps.reshape(B * Nr, D),
        _as_mask_dtype(cand_rel_masks, dtype).reshape(B * Nr, 1),
        edge_id, budget, floor, vmem_limit)
    return nodes.reshape(B, Ns, D), edges.reshape(B, Nr, D)


if __name__ == "__main__":
    d_model = 32
    B, num_spans, num_rels = 2, 8, 12

    key = jax.random.PRNGKey(0)
    k1, k2, k3, k4 = jax.random.split(key, 4)
    cand_span_reps = jax.random.normal(k1, (B, num_spans, d_model), jnp.float32)
    cand_rel_reps = jax.random.normal(k2, (B, num_rels, d_model), jnp.float32)
    cand_span_masks = jnp.array([[True] * num_spans,
                                 [True] * 5 + [False] * (num_spans - 5)],
                                dtype=bool)
    cand_rel_masks = jnp.array([[True] * num_rels,
                                [True] * 7 + [False] * (num_rels - 7)],
                               dtype=bool)
    # nn.Parameter(torch.zeros(d_model)) at init; use small random values here
    # so the identifier-add path is actually exercised (as it would be post-training).
    node_identifier = jax.random.normal(k3, (d_model,), jnp.float32) * 0.02
    edge_identifier = jax.random.normal(k4, (d_model,), jnp.float32) * 0.02

    nodes, edges = graph_embedder_forward(cand_span_reps, cand_rel_reps,
                                          cand_span_masks, cand_rel_masks,
                                          node_identifier, edge_identifier)
    jax.block_until_ready((nodes, edges))

    # Pure-JAX reference check (mirrors the PyTorch forward exactly).
    ref_nodes = (cand_span_reps * cand_span_masks.astype(jnp.float32)[:, :, None]
                 + node_identifier)
    ref_edges = (cand_rel_reps * cand_rel_masks.astype(jnp.float32)[:, :, None]
                 + edge_identifier)
    assert nodes.shape == (B, num_spans, d_model)
    assert edges.shape == (B, num_rels, d_model)
    assert jnp.allclose(nodes, ref_nodes, atol=1e-6)
    assert jnp.allclose(edges, ref_edges, atol=1e-6)
    print("KERNEL_OK")
</pallas_src>

<mosaic_0001>
module attributes {stable_mosaic.version = 11 : i64} {
  func.func @_graph_embed_fused_kernel(%arg0: i32, %arg1: memref<2x256xf32, #tpu.memory_space<vmem>>, %arg2: memref<2x384xf32, #tpu.memory_space<vmem>>, %arg3: memref<2x256xi8, #tpu.memory_space<vmem>>, %arg4: memref<2x384xi8, #tpu.memory_space<vmem>>, %arg5: memref<1x256xf32, #tpu.memory_space<vmem>>, %arg6: memref<1x384xf32, #tpu.memory_space<vmem>>, %arg7: memref<2x256xf32, #tpu.memory_space<vmem>>, %arg8: memref<2x384xf32, #tpu.memory_space<vmem>>) attributes {dimension_semantics = [#tpu.dimension_semantics<parallel>], iteration_bounds = array<i64: 1>, scalar_prefetch = 0 : i64, scratch_operands = 0 : i64, tpu.core_type = #tpu.core_type<tc>, window_params = [{transform_indices = @transform_0, window_bounds = array<i64: 2, 256>}, {transform_indices = @transform_1, window_bounds = array<i64: 2, 384>}, {transform_indices = @transform_2, window_bounds = array<i64: 2, 256>}, {transform_indices = @transform_3, window_bounds = array<i64: 2, 384>}, {pipeline_mode = #tpu.pipeline_mode<synchronous>, transform_indices = @transform_4, window_bounds = array<i64: 1, 256>}, {pipeline_mode = #tpu.pipeline_mode<synchronous>, transform_indices = @transform_5, window_bounds = array<i64: 1, 384>}, {transform_indices = @transform_6, window_bounds = array<i64: 2, 256>}, {transform_indices = @transform_7, window_bounds = array<i64: 2, 384>}]} {
    %c0 = arith.constant 0 : index
    %c0_0 = arith.constant 0 : index
    %0 = vector.load %arg1[%c0, %c0_0] : memref<2x256xf32, #tpu.memory_space<vmem>>, vector<2x256xf32>
    %c0_1 = arith.constant 0 : index
    %c0_2 = arith.constant 0 : index
    %1 = vector.load %arg2[%c0_1, %c0_2] : memref<2x384xf32, #tpu.memory_space<vmem>>, vector<2x384xf32>
    %c0_3 = arith.constant 0 : index
    %c0_4 = arith.constant 0 : index
    %2 = vector.load %arg3[%c0_3, %c0_4] : memref<2x256xi8, #tpu.memory_space<vmem>>, vector<2x256xi8>
    %3 = arith.sitofp %2 : vector<2x256xi8> to vector<2x256xf32>
    %4 = arith.mulf %0, %3 : vector<2x256xf32>
    %c0_5 = arith.constant 0 : index
    %c0_6 = arith.constant 0 : index
    %5 = vector.load %arg5[%c0_5, %c0_6] : memref<1x256xf32, #tpu.memory_space<vmem>>, vector<1x256xf32>
    %6 = vector.broadcast %5 : vector<1x256xf32> to vector<2x256xf32>
    %7 = arith.addf %4, %6 : vector<2x256xf32>
    %c0_7 = arith.constant 0 : index
    %c0_8 = arith.constant 0 : index
    %8 = vector.load %arg7[%c0_7, %c0_8] : memref<2x256xf32, #tpu.memory_space<vmem>>, vector<2x256xf32>
    tpu.vector_store %arg7[%c0_7, %c0_8], %7 {strides = array<i32>} : memref<2x256xf32, #tpu.memory_space<vmem>>, vector<2x256xf32>,
    %c0_9 = arith.constant 0 : index
    %c0_10 = arith.constant 0 : index
    %9 = vector.load %arg4[%c0_9, %c0_10] : memref<2x384xi8, #tpu.memory_space<vmem>>, vector<2x384xi8>
    %10 = arith.sitofp %9 : vector<2x384xi8> to vector<2x384xf32>
    %11 = arith.mulf %1, %10 : vector<2x384xf32>
    %c0_11 = arith.constant 0 : index
    %c0_12 = arith.constant 0 : index
    %12 = vector.load %arg6[%c0_11, %c0_12] : memref<1x384xf32, #tpu.memory_space<vmem>>, vector<1x384xf32>
    %13 = vector.broadcast %12 : vector<1x384xf32> to vector<2x384xf32>
    %14 = arith.addf %11, %13 : vector<2x384xf32>
    %c0_13 = arith.constant 0 : index
    %c0_14 = arith.constant 0 : index
    %15 = vector.load %arg8[%c0_13, %c0_14] : memref<2x384xf32, #tpu.memory_space<vmem>>, vector<2x384xf32>
    tpu.vector_store %arg8[%c0_13, %c0_14], %14 {strides = array<i32>} : memref<2x384xf32, #tpu.memory_space<vmem>>, vector<2x384xf32>,
    return
  }
  func.func @transform_0(%arg0: i32) -> (i32, i32) {
    %c0_i32 = arith.constant 0 : i32
    %c0_i32_0 = arith.constant 0 : i32
    return %arg0, %c0_i32 : i32, i32
  }
  func.func @transform_1(%arg0: i32) -> (i32, i32) {
    %c0_i32 = arith.constant 0 : i32
    %c0_i32_0 = arith.constant 0 : i32
    return %arg0, %c0_i32 : i32, i32
  }
  func.func @transform_2(%arg0: i32) -> (i32, i32) {
    %c0_i32 = arith.constant 0 : i32
    %c0_i32_0 = arith.constant 0 : i32
    return %arg0, %c0_i32 : i32, i32
  }
  func.func @transform_3(%arg0: i32) -> (i32, i32) {
    %c0_i32 = arith.constant 0 : i32
    %c0_i32_0 = arith.constant 0 : i32
    return %arg0, %c0_i32 : i32, i32
  }
  func.func @transform_4(%arg0: i32) -> (i32, i32) {
    %c0_i32 = arith.constant 0 : i32
    %c0_i32_0 = arith.constant 0 : i32
    %c0_i32_1 = arith.constant 0 : i32
    return %c0_i32, %c0_i32_0 : i32, i32
  }
  func.func @transform_5(%arg0: i32) -> (i32, i32) {
    %c0_i32 = arith.constant 0 : i32
    %c0_i32_0 = arith.constant 0 : i32
    %c0_i32_1 = arith.constant 0 : i32
    return %c0_i32, %c0_i32_0 : i32, i32
  }
  func.func @transform_6(%arg0: i32) -> (i32, i32) {
    %c0_i32 = arith.constant 0 : i32
    %c0_i32_0 = arith.constant 0 : i32
    return %arg0, %c0_i32 : i32, i32
  }
  func.func @transform_7(%arg0: i32) -> (i32, i32) {
    %c0_i32 = arith.constant 0 : i32
    %c0_i32_0 = arith.constant 0 : i32
    return %arg0, %c0_i32 : i32, i32
  }
}

</mosaic_0001>

<llo_original>
// kernel: tpu_custom_call.1
$region0: #{tpu_custom_call.1}
  #allocation0 [shape = 'u32[]', space=smem, size = 0x4, offset = 0x4, fixed_abs, tag = 'smem constant byte address 0x4 - core index']
  #allocation1 [shape = 'u32[72,128]{1,0:T(1,128)}', space=vmem, size = 0x9000, scoped, tag = 'internal scratch']
  %s0 = inlined_call_operand.hbm [shape: f32[2,256], index: 0, kind: input, shape index: {}]
  %s1 = inlined_call_operand.hbm [shape: f32[2,384], index: 1, kind: input, shape index: {}]
  %s2 = inlined_call_operand.hbm [shape: s8[2,256], index: 2, kind: input, shape index: {}]
  %s3 = inlined_call_operand.hbm [shape: s8[2,384], index: 3, kind: input, shape index: {}]
  %s4 = inlined_call_operand.hbm [shape: f32[1,256], index: 4, kind: input, shape index: {}]
  %s5 = inlined_call_operand.vmem [shape: f32[1,384], index: 5, kind: input, shape index: {}]
  %s6 = inlined_call_operand.hbm [shape: f32[2,256], index: 6, kind: output, shape index: {0}]
  %s7 = inlined_call_operand.hbm [shape: f32[2,384], index: 7, kind: output, shape index: {1}]
  %8 = xla_tuple %s6, %s7
  %s9 = sld [smem:[#allocation0]]
  $region62: #{tpu_custom_call.1} parent=0
    _
  %s11 = ssub.s32 1, %s9
  %s12 = scalar_select 0, %s11, %s9
  $region1: #{tpu_custom_call.1} parent=0
    #allocation2 [shape = 'u8[2048]{0}', space=vmem, size = 0x800, scoped, tag = 'input window, operand 0, single buffered']
    #allocation3 [shape = 's32[1]{0}', space=sflag, size = 0x4, scoped, tag = 'scoped memory for tpu_custom_call.1']
    #allocation4 [shape = 's32[1]{0}', space=sflag, size = 0x4, scoped, tag = 'scoped memory for tpu_custom_call.1']
    #allocation5 [shape = 'u8[3072]{0}', space=vmem, size = 0xc00, scoped, tag = 'input window, operand 1, single buffered']
    #allocation6 [shape = 's32[1]{0}', space=sflag, size = 0x4, scoped, tag = 'scoped memory for tpu_custom_call.1']
    #allocation7 [shape = 'u8[1024]{0}', space=vmem, size = 0x400, scoped, tag = 'input window, operand 2, single buffered']
    #allocation8 [shape = 'u8[1536]{0}', space=vmem, size = 0x800, scoped, tag = 'input window, operand 3, single buffered']
    #allocation9 [shape = 's32[1]{0}', space=sflag, size = 0x4, scoped, tag = 'scoped memory for tpu_custom_call.1']
    #allocation10 [shape = 'u8[1024]{0}', space=vmem, size = 0x400, scoped, tag = 'input window, operand 4, single buffered']
    #allocation11 [shape = 'u8[2048]{0}', space=vmem, size = 0x800, scoped, tag = 'output window, operand 0, single buffered']
    #allocation12 [shape = 'u8[3072]{0}', space=vmem, size = 0xc00, scoped, tag = 'output window, operand 1, single buffered']
    #allocation13 [shape = 's32[1]{0}', space=sflag, size = 0x4, scoped, tag = 'scoped memory for tpu_custom_call.1']
    %13 = vsyncpa [#allocation3], 0
    %14 = vsyncpa [#allocation6], 0
    %15 = vsyncpa [#allocation9], 0
    %16 = vsyncpa [#allocation4], 0
    %17 = vsyncpa [#allocation13], 0
    // Predicated region
    $region2: #{tpu_custom_call.1} parent=1 // pred_check
      _
    $region3: #{tpu_custom_call.1} parent=1 // pred_check_branch
      %19 = sbr.rel (0) target = $region5
    $region4: #{tpu_custom_call.1} parent=1 // pred_region
      %21 = vsyncadd [#allocation3], 0
      %s23 = sshll.u32 %s0, 4
      %s24 = int_to_ptr.hbm [resolvable:$true] %s23
      %s25 = sshll.u32 [#allocation2], 4
      %s26 = int_to_ptr.vmem [resolvable:$true] %s25
      %28 = dma.hbm_to_vmem [thread:$0]  %s24, 64, %s26, [#allocation3]
    $region5: #{tpu_custom_call.1} parent=1 // pred_fallthru
      _
    // Predicated region
    $region6: #{tpu_custom_call.1} parent=1 // pred_check
      _
    $region7: #{tpu_custom_call.1} parent=1 // pred_check_branch
      %30 = sbr.rel (0) target = $region9
    $region8: #{tpu_custom_call.1} parent=1 // pred_region
      %32 = vsyncadd [#allocation6], 0
      %s34 = sshll.u32 %s1, 4
      %s35 = int_to_ptr.hbm [resolvable:$true] %s34
      %s36 = sshll.u32 [#allocation5], 4
      %s37 = int_to_ptr.vmem [resolvable:$true] %s36
      %39 = dma.hbm_to_vmem [thread:$0]  %s35, 96, %s37, [#allocation6]
    $region9: #{tpu_custom_call.1} parent=1 // pred_fallthru
      _
    // Predicated region
    $region10: #{tpu_custom_call.1} parent=1 // pred_check
      _
    $region11: #{tpu_custom_call.1} parent=1 // pred_check_branch
      %41 = sbr.rel (0) target = $region13
    $region12: #{tpu_custom_call.1} parent=1 // pred_region
      %43 = vsyncadd [#allocation6], 0
      %s45 = sshll.u32 %s2, 4
      %s46 = int_to_ptr.hbm [resolvable:$true] %s45
      %s47 = sshll.u32 [#allocation7], 4
      %s48 = int_to_ptr.vmem [resolvable:$true] %s47
      %50 = dma.hbm_to_vmem [thread:$0]  %s46, 32, %s48, [#allocation6]
    $region13: #{tpu_custom_call.1} parent=1 // pred_fallthru
      _
    // Predicated region
    $region14: #{tpu_custom_call.1} parent=1 // pred_check
      _
    $region15: #{tpu_custom_call.1} parent=1 // pred_check_branch
      %52 = sbr.rel (0) target = $region17
    $region16: #{tpu_custom_call.1} parent=1 // pred_region
      %54 = vsyncadd [#allocation9], 0
      %s56 = sshll.u32 %s3, 4
      %s57 = int_to_ptr.hbm [resolvable:$true] %s56
      %s58 = sshll.u32 [#allocation8], 4
      %s59 = int_to_ptr.vmem [resolvable:$true] %s58
      %61 = dma.hbm_to_vmem [thread:$0]  %s57, 48, %s59, [#allocation9]
    $region17: #{tpu_custom_call.1} parent=1 // pred_fallthru
      _
    // Predicated region
    $region18: #{tpu_custom_call.1} parent=1 // pred_check
      _
    $region19: #{tpu_custom_call.1} parent=1 // pred_check_branch
      %63 = sbr.rel (0) target = $region21
    $region20: #{tpu_custom_call.1} parent=1 // pred_region
      %65 = vsyncadd [#allocation9], 0
      %s67 = sshll.u32 %s4, 4
      %s68 = int_to_ptr.hbm [resolvable:$true] %s67
      %s69 = sshll.u32 [#allocation10], 4
      %s70 = int_to_ptr.vmem [resolvable:$true] %s69
      %72 = dma.hbm_to_vmem [thread:$0]  %s68, 32, %s70, [#allocation9]
    $region21: #{tpu_custom_call.1} parent=1 // pred_fallthru
      _
    // Predicated region
    $region22: #{tpu_custom_call.1} parent=1 // pred_check
      _
    $region23: #{tpu_custom_call.1} parent=1 // pred_check_branch
      %74 = sbr.rel (0) target = $region25
    $region24: #{tpu_custom_call.1} parent=1 // pred_region
      _
    $region25: #{tpu_custom_call.1} parent=1 // pred_fallthru
      _
    // Predicated region
    $region26: #{tpu_custom_call.1} parent=1 // pred_check
      _
    $region27: #{tpu_custom_call.1} parent=1 // pred_check_branch
      %76 = sbr.rel (0) target = $region29
    $region28: #{tpu_custom_call.1} parent=1 // pred_region
      %78 = dma.done [#allocation3], 64
    $region29: #{tpu_custom_call.1} parent=1 // pred_fallthru
      _
    // Predicated region
    $region30: #{tpu_custom_call.1} parent=1 // pred_check
      _
    $region31: #{tpu_custom_call.1} parent=1 // pred_check_branch
      %80 = sbr.rel (0) target = $region33
    $region32: #{tpu_custom_call.1} parent=1 // pred_region
      %82 = dma.done [#allocation6], 96
    $region33: #{tpu_custom_call.1} parent=1 // pred_fallthru
      _
    // Predicated region
    $region34: #{tpu_custom_call.1} parent=1 // pred_check
      _
    $region35: #{tpu_custom_call.1} parent=1 // pred_check_branch
      %84 = sbr.rel (0) target = $region37
    $region36: #{tpu_custom_call.1} parent=1 // pred_region
      %86 = dma.done [#allocation6], 32
    $region37: #{tpu_custom_call.1} parent=1 // pred_fallthru
      _
    // Predicated region
    $region38: #{tpu_custom_call.1} parent=1 // pred_check
      _
    $region39: #{tpu_custom_call.1} parent=1 // pred_check_branch
      %88 = sbr.rel (0) target = $region41
    $region40: #{tpu_custom_call.1} parent=1 // pred_region
      %90 = dma.done [#allocation9], 48
    $region41: #{tpu_custom_call.1} parent=1 // pred_fallthru
      _
    // Predicated region
    $region42: #{tpu_custom_call.1} parent=1 // pred_check
      _
    $region43: #{tpu_custom_call.1} parent=1 // pred_check_branch
      %92 = sbr.rel (0) target = $region45
    $region44: #{tpu_custom_call.1} parent=1 // pred_region
      %94 = dma.done [#allocation9], 32
    $region45: #{tpu_custom_call.1} parent=1 // pred_fallthru
      _
    %v95 = vld [vmem:[#allocation2] sm:$0xf]
    %v96 = vld [vmem:[#allocation5] sm:$0x3f]
    %v97 = vld [vmem:[#allocation7] sm:$0x3]
    %v98 = vunpack.c.0.s8 %v97
    %v99 = vcvt.s32.f32 %v98
    %v101 = vrot.slane %v99, 2
    %vm102 = vcmask 1041408
    %v103 = vsel %vm102, %v99, %v101
    %v105 = vmul.f32 %v95, %v103
    %v106 = vld [vmem:[#allocation10] sm:$0x3]
    %v108 = vperm.slane %v106, 0
    %v109 = vperm.slane %v106, 1
    %v110 = vrot.slane %v109, 6
    %v111 = vsel %vm102, %v108, %v110
    %v113 = vadd.f32 %v105, %v111
    %114 = vst [vmem:[#allocation11] sm:$0xf] %v113
    %v115 = vld [vmem:[#allocation8] sm:$0x7]
    %v116 = vunpack.c.0.s8 %v115
    %v117 = vunpack.c.1.s8 %v115
    %v118 = vcvt.s32.f32 %v116
    %v119 = vcvt.s32.f32 %v117
    %v122 = vrot.slane %v118, 2
    %v123 = vrot.slane %v119, 4
    %v124 = vrot.slane %v119, 6
    %v125 = vsel %vm102, %v118, %v122
    %vm126 = vcmask 1045508
    %v127 = vsel %vm126, %v123, %v124
    %vm128 = vcmask 1043456
    %v129 = vsel %vm128, %v125, %v127
    %v131 = vmul.f32 %v96, %v129
    %v132 = vld [vmem:[%s5] sm:$0x7]
    %v134 = vperm.slane %v132, 0
    %v135 = vperm.slane %v132, 1
    %v136 = vperm.slane %v132, 2
    %v137 = vrot.slane %v135, 6
    %v138 = vrot.slane %v136, 4
    %v139 = vsel %vm102, %v134, %v137
    %v140 = vsel %vm128, %v139, %v138
    %v142 = vadd.f32 %v131, %v140
    %143 = vst [vmem:[#allocation12] sm:$0x3f] %v142
    // Predicated region
    $region46: #{tpu_custom_call.1} parent=1 // pred_check
      _
    $region47: #{tpu_custom_call.1} parent=1 // pred_check_branch
      %145 = sbr.rel (0) target = $region49
    $region48: #{tpu_custom_call.1} parent=1 // pred_region
      %147 = vsyncadd [#allocation4], 0
      %s149 = sshll.u32 [#allocation11], 4
      %s150 = int_to_ptr.vmem [resolvable:$true] %s149
      %s151 = sshll.u32 %s6, 4
      %s152 = int_to_ptr.hbm [resolvable:$true] %s151
      %154 = dma.vmem_to_hbm [thread:$0]  %s150, 64, %s152, [#allocation4]
    $region49: #{tpu_custom_call.1} parent=1 // pred_fallthru
      _
    // Predicated region
    $region50: #{tpu_custom_call.1} parent=1 // pred_check
      _
    $region51: #{tpu_custom_call.1} parent=1 // pred_check_branch
      %156 = sbr.rel (0) target = $region53
    $region52: #{tpu_custom_call.1} parent=1 // pred_region
      %158 = vsyncadd [#allocation13], 0
      %s160 = sshll.u32 [#allocation12], 4
      %s161 = int_to_ptr.vmem [resolvable:$true] %s160
      %s162 = sshll.u32 %s7, 4
      %s163 = int_to_ptr.hbm [resolvable:$true] %s162
      %165 = dma.vmem_to_hbm [thread:$0]  %s161, 96, %s163, [#allocation13]
    $region53: #{tpu_custom_call.1} parent=1 // pred_fallthru
      _
    // Predicated region
    $region54: #{tpu_custom_call.1} parent=1 // pred_check
      _
    $region55: #{tpu_custom_call.1} parent=1 // pred_check_branch
      %167 = sbr.rel (0) target = $region57
    $region56: #{tpu_custom_call.1} parent=1 // pred_region
      %169 = dma.done [#allocation4], 64
    $region57: #{tpu_custom_call.1} parent=1 // pred_fallthru
      _
    // Predicated region
    $region58: #{tpu_custom_call.1} parent=1 // pred_check
      _
    $region59: #{tpu_custom_call.1} parent=1 // pred_check_branch
      %171 = sbr.rel (0) target = $region61
    $region60: #{tpu_custom_call.1} parent=1 // pred_region
      %173 = dma.done [#allocation13], 96
    $region61: #{tpu_custom_call.1} parent=1 // pred_fallthru
      _
    %174 = vsyncpa [#allocation3], 1
    %175 = vsyncpa [#allocation6], 1
    %176 = vsyncpa [#allocation9], 1
    %177 = vsyncpa [#allocation4], 1
    %178 = vsyncpa [#allocation13], 1

</llo_original>
